<compile_context>
chip_gen: v6e
topology: v6e:2x2x1
jax: 0.10.0
libtpu: 0.0.40
codegen_flags: <defaults>
</compile_context>

<pallas_src>
import jax
import jax.numpy as jnp
from jax.experimental import pallas as pl
from jax.experimental.pallas import tpu as pltpu


def _mlp_kernel(x_ref, w1_ref, b1_ref, w2_ref, b2_ref, w3_ref, b3_ref, o_ref):
    # Fused 3-layer MLP on one batch tile.
    x = x_ref[...].astype(jnp.bfloat16)

    # hidden1 + ReLU  (bf16 MXU operands, f32 accumulate, f32 epilogue)
    h1 = jnp.dot(x, w1_ref[...].astype(jnp.bfloat16),
                 preferred_element_type=jnp.float32) + b1_ref[...]
    h1 = jnp.maximum(h1, 0.0)

    # hidden2 + Sigmoid  (exp and reciprocal both land on the EUP slot)
    h2 = jnp.dot(h1.astype(jnp.bfloat16), w2_ref[...].astype(jnp.bfloat16),
                 preferred_element_type=jnp.float32) + b2_ref[...]
    h2 = pl.reciprocal(1.0 + jnp.exp(-h2), approx=True)

    # predict (no activation)
    out = jnp.dot(h2.astype(jnp.bfloat16), w3_ref[...].astype(jnp.bfloat16),
                  preferred_element_type=jnp.float32) + b3_ref[...]
    o_ref[...] = out.astype(o_ref.dtype)


def _pick_tile_b(B):
    """Batch tile: multiple of 8 (sublane); for large B use >=2 grid steps
    (v7x megacore) with 256-row granularity (MXU M dim), capped at 512 rows."""
    if B <= 512:
        return B  # one grid step; fixed per-step overhead dominates here anyway
    tile = min(512, -(-B // 2))           # at least 2 grid steps
    tile = max(256, (tile // 256) * 256)  # multiple of 256 (also of 8)
    return tile


def net_forward(x, params, *, tile_b=None):
    """Run the fused MLP. x: (B, n_input) float32."""
    w1, b1, w2, b2, w3, b3 = params
    B, n_in = x.shape
    n_hidden = w1.shape[1]
    n_out = w3.shape[1]

    if tile_b is None:
        tile_b = _pick_tile_b(B)
    # (8,128) BlockSpec rule: batch tile must be a multiple of 8 or == full batch.
    assert tile_b == B or tile_b % 8 == 0, "tile_b must be a multiple of 8 or == B"

    grid = (pl.cdiv(B, tile_b),)

    def batch_map(i):
        return (i, 0)

    def full_map(i):
        return (0, 0)

    return pl.pallas_call(
        _mlp_kernel,
        out_shape=jax.ShapeDtypeStruct((B, n_out), x.dtype),
        grid_spec=pl.GridSpec(
            grid=grid,
            in_specs=[
                pl.BlockSpec((tile_b, n_in), batch_map),       # x tile
                pl.BlockSpec((n_in, n_hidden), full_map),      # W1 (resident)
                pl.BlockSpec((1, n_hidden), full_map),         # b1
                pl.BlockSpec((n_hidden, n_hidden), full_map),  # W2 (resident)
                pl.BlockSpec((1, n_hidden), full_map),         # b2
                pl.BlockSpec((n_hidden, n_out), full_map),     # W3 (resident)
                pl.BlockSpec((1, n_out), full_map),            # b3
            ],
            out_specs=pl.BlockSpec((tile_b, n_out), batch_map),
        ),
        compiler_params=pltpu.CompilerParams(
            dimension_semantics=("parallel",),       # batch axis -> megacore
            vmem_limit_bytes=32 * 1024 * 1024,       # explicit VMEM budget
        ),
    )(x, w1, b1, w2, b2, w3, b3)


def init_params(key, n_input, n_hidden, n_output, dtype=jnp.float32):
    """Deterministic init matching nn.Linear's U(-1/sqrt(fan_in), 1/sqrt(fan_in))."""
    ks = jax.random.split(key, 6)

    def linear(kw, kb, fan_in, fan_out):
        bound = 1.0 / jnp.sqrt(fan_in)
        # store W transposed: (in, out)
        w = jax.random.uniform(kw, (fan_in, fan_out), dtype, -bound, bound)
        b = jax.random.uniform(kb, (1, fan_out), dtype, -bound, bound)
        return w, b

    w1, b1 = linear(ks[0], ks[1], n_input, n_hidden)
    w2, b2 = linear(ks[2], ks[3], n_hidden, n_hidden)
    w3, b3 = linear(ks[4], ks[5], n_hidden, n_output)
    return (w1, b1, w2, b2, w3, b3)


def net_forward_ref(x, params):
    """Pure-JAX f32 reference for correctness checking."""
    w1, b1, w2, b2, w3, b3 = params
    h1 = jnp.maximum(x @ w1 + b1, 0.0)
    h2 = jax.nn.sigmoid(h1 @ w2 + b2)
    return h2 @ w3 + b3


if __name__ == "__main__":
    # Small shapes consistent with the module: n_input=16, n_hidden=32, n_output=8
    B, n_input, n_hidden, n_output = 8, 16, 32, 8

    key = jax.random.PRNGKey(0)
    k_x, k_p = jax.random.split(key)

    x = jax.random.normal(k_x, (B, n_input), dtype=jnp.float32)
    params = init_params(k_p, n_input, n_hidden, n_output)

    out = net_forward(x, params)
    out = jax.block_until_ready(out)

    ref = net_forward_ref(x, params)
    assert out.shape == (B, n_output), out.shape
    # bf16 MXU operands + approx reciprocal -> compare against the f32 reference
    # with a tolerance that comfortably covers bf16 rounding at these magnitudes.
    assert jnp.allclose(out, ref, atol=3e-2, rtol=3e-2), "mismatch vs reference"

    print("KERNEL_OK")
</pallas_src>

<mosaic_0001>
module attributes {stable_mosaic.version = 11 : i64} {
  func.func @_mlp_kernel(%arg0: i32, %arg1: memref<8x16xf32, #tpu.memory_space<vmem>>, %arg2: memref<16x32xf32, #tpu.memory_space<vmem>>, %arg3: memref<1x32xf32, #tpu.memory_space<vmem>>, %arg4: memref<32x32xf32, #tpu.memory_space<vmem>>, %arg5: memref<1x32xf32, #tpu.memory_space<vmem>>, %arg6: memref<32x8xf32, #tpu.memory_space<vmem>>, %arg7: memref<1x8xf32, #tpu.memory_space<vmem>>, %arg8: memref<8x8xf32, #tpu.memory_space<vmem>>) attributes {dimension_semantics = [#tpu.dimension_semantics<parallel>], iteration_bounds = array<i64: 1>, scalar_prefetch = 0 : i64, scratch_operands = 0 : i64, tpu.core_type = #tpu.core_type<tc>, window_params = [{transform_indices = @transform_0, window_bounds = array<i64: 8, 16>}, {pipeline_mode = #tpu.pipeline_mode<synchronous>, transform_indices = @transform_1, window_bounds = array<i64: 16, 32>}, {pipeline_mode = #tpu.pipeline_mode<synchronous>, transform_indices = @transform_2, window_bounds = array<i64: 1, 32>}, {pipeline_mode = #tpu.pipeline_mode<synchronous>, transform_indices = @transform_3, window_bounds = array<i64: 32, 32>}, {pipeline_mode = #tpu.pipeline_mode<synchronous>, transform_indices = @transform_4, window_bounds = array<i64: 1, 32>}, {pipeline_mode = #tpu.pipeline_mode<synchronous>, transform_indices = @transform_5, window_bounds = array<i64: 32, 8>}, {pipeline_mode = #tpu.pipeline_mode<synchronous>, transform_indices = @transform_6, window_bounds = array<i64: 1, 8>}, {transform_indices = @transform_7, window_bounds = array<i64: 8, 8>}]} {
    %c0 = arith.constant 0 : index
    %c0_0 = arith.constant 0 : index
    %0 = vector.load %arg1[%c0, %c0_0] : memref<8x16xf32, #tpu.memory_space<vmem>>, vector<8x16xf32>
    %1 = arith.truncf %0 : vector<8x16xf32> to vector<8x16xbf16>
    %c0_1 = arith.constant 0 : index
    %c0_2 = arith.constant 0 : index
    %2 = vector.load %arg2[%c0_1, %c0_2] : memref<16x32xf32, #tpu.memory_space<vmem>>, vector<16x32xf32>
    %3 = arith.truncf %2 : vector<16x32xf32> to vector<16x32xbf16>
    %cst = arith.constant dense<0.000000e+00> : vector<8x32xf32>
    %4 = tpu.matmul %1, %3, %cst {dimension_numbers = #tpu.dot_dimension_numbers<[1], [0], [0], [1], [0, 0, 1, 1], [], []>} : vector<8x16xbf16>, vector<16x32xbf16>, vector<8x32xf32> -> vector<8x32xf32>
    %c0_3 = arith.constant 0 : index
    %c0_4 = arith.constant 0 : index
    %5 = vector.load %arg3[%c0_3, %c0_4] : memref<1x32xf32, #tpu.memory_space<vmem>>, vector<1x32xf32>
    %6 = vector.broadcast %5 : vector<1x32xf32> to vector<8x32xf32>
    %7 = arith.addf %4, %6 : vector<8x32xf32>
    %cst_5 = arith.constant 0.000000e+00 : f32
    %8 = vector.broadcast %cst_5 : f32 to vector<8x32xf32>
    %9 = arith.maximumf %7, %8 : vector<8x32xf32>
    %10 = arith.truncf %9 : vector<8x32xf32> to vector<8x32xbf16>
    %c0_6 = arith.constant 0 : index
    %c0_7 = arith.constant 0 : index
    %11 = vector.load %arg4[%c0_6, %c0_7] : memref<32x32xf32, #tpu.memory_space<vmem>>, vector<32x32xf32>
    %12 = arith.truncf %11 : vector<32x32xf32> to vector<32x32xbf16>
    %cst_8 = arith.constant dense<0.000000e+00> : vector<8x32xf32>
    %13 = tpu.matmul %10, %12, %cst_8 {dimension_numbers = #tpu.dot_dimension_numbers<[1], [0], [0], [1], [0, 0, 1, 1], [], []>} : vector<8x32xbf16>, vector<32x32xbf16>, vector<8x32xf32> -> vector<8x32xf32>
    %c0_9 = arith.constant 0 : index
    %c0_10 = arith.constant 0 : index
    %14 = vector.load %arg5[%c0_9, %c0_10] : memref<1x32xf32, #tpu.memory_space<vmem>>, vector<1x32xf32>
    %15 = vector.broadcast %14 : vector<1x32xf32> to vector<8x32xf32>
    %16 = arith.addf %13, %15 : vector<8x32xf32>
    %cst_11 = arith.constant 0.000000e+00 : f32
    %17 = vector.broadcast %cst_11 : f32 to vector<8x32xf32>
    %18 = arith.subf %17, %16 : vector<8x32xf32>
    %19 = math.exp %18 : vector<8x32xf32>
    %cst_12 = arith.constant 1.000000e+00 : f32
    %20 = vector.broadcast %cst_12 : f32 to vector<8x32xf32>
    %21 = arith.addf %20, %19 : vector<8x32xf32>
    %22 = tpu.reciprocal %21 {approx = true} : vector<8x32xf32> -> vector<8x32xf32>
    %23 = arith.truncf %22 : vector<8x32xf32> to vector<8x32xbf16>
    %c0_13 = arith.constant 0 : index
    %c0_14 = arith.constant 0 : index
    %24 = vector.load %arg6[%c0_13, %c0_14] : memref<32x8xf32, #tpu.memory_space<vmem>>, vector<32x8xf32>
    %25 = arith.truncf %24 : vector<32x8xf32> to vector<32x8xbf16>
    %cst_15 = arith.constant dense<0.000000e+00> : vector<8x8xf32>
    %26 = tpu.matmul %23, %25, %cst_15 {dimension_numbers = #tpu.dot_dimension_numbers<[1], [0], [0], [1], [0, 0, 1, 1], [], []>} : vector<8x32xbf16>, vector<32x8xbf16>, vector<8x8xf32> -> vector<8x8xf32>
    %c0_16 = arith.constant 0 : index
    %c0_17 = arith.constant 0 : index
    %27 = vector.load %arg7[%c0_16, %c0_17] : memref<1x8xf32, #tpu.memory_space<vmem>>, vector<1x8xf32>
    %28 = vector.broadcast %27 : vector<1x8xf32> to vector<8x8xf32>
    %29 = arith.addf %26, %28 : vector<8x8xf32>
    %c0_18 = arith.constant 0 : index
    %c0_19 = arith.constant 0 : index
    %30 = vector.load %arg8[%c0_18, %c0_19] : memref<8x8xf32, #tpu.memory_space<vmem>>, vector<8x8xf32>
    tpu.vector_store %arg8[%c0_18, %c0_19], %29 {strides = array<i32>} : memref<8x8xf32, #tpu.memory_space<vmem>>, vector<8x8xf32>,
    return
  }
  func.func @transform_0(%arg0: i32) -> (i32, i32) {
    %c0_i32 = arith.constant 0 : i32
    %c0_i32_0 = arith.constant 0 : i32
    return %arg0, %c0_i32 : i32, i32
  }
  func.func @transform_1(%arg0: i32) -> (i32, i32) {
    %c0_i32 = arith.constant 0 : i32
    %c0_i32_0 = arith.constant 0 : i32
    %c0_i32_1 = arith.constant 0 : i32
    return %c0_i32, %c0_i32_0 : i32, i32
  }
  func.func @transform_2(%arg0: i32) -> (i32, i32) {
    %c0_i32 = arith.constant 0 : i32
    %c0_i32_0 = arith.constant 0 : i32
    %c0_i32_1 = arith.constant 0 : i32
    return %c0_i32, %c0_i32_0 : i32, i32
  }
  func.func @transform_3(%arg0: i32) -> (i32, i32) {
    %c0_i32 = arith.constant 0 : i32
    %c0_i32_0 = arith.constant 0 : i32
    %c0_i32_1 = arith.constant 0 : i32
    return %c0_i32, %c0_i32_0 : i32, i32
  }
  func.func @transform_4(%arg0: i32) -> (i32, i32) {
    %c0_i32 = arith.constant 0 : i32
    %c0_i32_0 = arith.constant 0 : i32
    %c0_i32_1 = arith.constant 0 : i32
    return %c0_i32, %c0_i32_0 : i32, i32
  }
  func.func @transform_5(%arg0: i32) -> (i32, i32) {
    %c0_i32 = arith.constant 0 : i32
    %c0_i32_0 = arith.constant 0 : i32
    %c0_i32_1 = arith.constant 0 : i32
    return %c0_i32, %c0_i32_0 : i32, i32
  }
  func.func @transform_6(%arg0: i32) -> (i32, i32) {
    %c0_i32 = arith.constant 0 : i32
    %c0_i32_0 = arith.constant 0 : i32
    %c0_i32_1 = arith.constant 0 : i32
    return %c0_i32, %c0_i32_0 : i32, i32
  }
  func.func @transform_7(%arg0: i32) -> (i32, i32) {
    %c0_i32 = arith.constant 0 : i32
    %c0_i32_0 = arith.constant 0 : i32
    return %arg0, %c0_i32 : i32, i32
  }
}

</mosaic_0001>

<llo_original>
// kernel: tpu_custom_call.1
$region0: #{tpu_custom_call.1}
  #allocation0 [shape = 'u32[]', space=smem, size = 0x4, offset = 0x4, fixed_abs, tag = 'smem constant byte address 0x4 - core index']
  #allocation1 [shape = 'u32[144,128]{1,0:T(1,128)}', space=vmem, size = 0x12000, scoped, tag = 'internal scratch']
  %s0 = inlined_call_operand.vmem [shape: f32[8,16], index: 0, kind: input, shape index: {}]
  %s1 = inlined_call_operand.hbm [shape: f32[16,32], index: 1, kind: input, shape index: {}]
  %s2 = inlined_call_operand.vmem [shape: f32[1,32], index: 2, kind: input, shape index: {}]
  %s3 = inlined_call_operand.vmem [shape: f32[32,32], index: 3, kind: input, shape index: {}]
  %s4 = inlined_call_operand.hbm [shape: f32[1,32], index: 4, kind: input, shape index: {}]
  %s5 = inlined_call_operand.vmem [shape: f32[32,8], index: 5, kind: input, shape index: {}]
  %s6 = inlined_call_operand.vmem [shape: f32[1,8], index: 6, kind: input, shape index: {}]
  %s7 = inlined_call_operand.hbm [shape: f32[8,8], index: 7, kind: output, shape index: {}]
  %s8 = sld [smem:[#allocation0]]
  $region46: #{tpu_custom_call.1} parent=0
    _
  %s10 = ssub.s32 1, %s8
  %s11 = scalar_select 0, %s10, %s8
  $region1: #{tpu_custom_call.1} parent=0
    #allocation2 [shape = 'u8[8192]{0}', space=vmem, size = 0x2000, scoped, tag = 'input window, operand 1, single buffered']
    #allocation3 [shape = 's32[1]{0}', space=sflag, size = 0x4, scoped, tag = 'scoped memory for tpu_custom_call.1']
    #allocation4 [shape = 's32[1]{0}', space=sflag, size = 0x4, scoped, tag = 'scoped memory for tpu_custom_call.1']
    #allocation5 [shape = 'u8[512]{0}', space=vmem, size = 0x400, scoped, tag = 'input window, operand 4, single buffered']
    #allocation6 [shape = 's32[1]{0}', space=sflag, size = 0x4, scoped, tag = 'scoped memory for tpu_custom_call.1']
    #allocation7 [shape = 'u8[4096]{0}', space=vmem, size = 0x1000, scoped, tag = 'output window, operand 0, single buffered']
    %12 = vsyncpa [#allocation3], 0
    %13 = vsyncpa [#allocation6], 0
    %14 = vsyncpa [#allocation4], 0
    // Predicated region
    $region2: #{tpu_custom_call.1} parent=1 // pred_check
      _
    $region3: #{tpu_custom_call.1} parent=1 // pred_check_branch
      %16 = sbr.rel (0) target = $region5
    $region4: #{tpu_custom_call.1} parent=1 // pred_region
      _
    $region5: #{tpu_custom_call.1} parent=1 // pred_fallthru
      _
    // Predicated region
    $region6: #{tpu_custom_call.1} parent=1 // pred_check
      _
    $region7: #{tpu_custom_call.1} parent=1 // pred_check_branch
      %18 = sbr.rel (0) target = $region9
    $region8: #{tpu_custom_call.1} parent=1 // pred_region
      %s20 = ssub.s32 256, 256
      %21 = vsyncadd [#allocation3], %s20
      %s22 = sshll.u32 [#allocation2], 4
      %s23 = int_to_ptr.vmem [resolvable:$true] %s22
      %28 = dma.hbm_to_vmem [thread:$0]  %s1, 256, %s23, [#allocation3], 128, 128, 8
    $region9: #{tpu_custom_call.1} parent=1 // pred_fallthru
      _
    // Predicated region
    $region10: #{tpu_custom_call.1} parent=1 // pred_check
      _
    $region11: #{tpu_custom_call.1} parent=1 // pred_check_branch
      %30 = sbr.rel (0) target = $region13
    $region12: #{tpu_custom_call.1} parent=1 // pred_region
      _
    $region13: #{tpu_custom_call.1} parent=1 // pred_fallthru
      _
    // Predicated region
    $region14: #{tpu_custom_call.1} parent=1 // pred_check
      _
    $region15: #{tpu_custom_call.1} parent=1 // pred_check_branch
      %32 = sbr.rel (0) target = $region17
    $region16: #{tpu_custom_call.1} parent=1 // pred_region
      _
    $region17: #{tpu_custom_call.1} parent=1 // pred_fallthru
      _
    // Predicated region
    $region18: #{tpu_custom_call.1} parent=1 // pred_check
      _
    $region19: #{tpu_custom_call.1} parent=1 // pred_check_branch
      %34 = sbr.rel (0) target = $region21
    $region20: #{tpu_custom_call.1} parent=1 // pred_region
      %s36 = ssub.s32 16, 16
      %37 = vsyncadd [#allocation6], %s36
      %s39 = sshll.u32 [#allocation5], 4
      %s40 = int_to_ptr.vmem [resolvable:$true] %s39
      %42 = dma.hbm_to_vmem [thread:$0]  %s4, 16, %s40, [#allocation6]
    $region21: #{tpu_custom_call.1} parent=1 // pred_fallthru
      _
    // Predicated region
    $region22: #{tpu_custom_call.1} parent=1 // pred_check
      _
    $region23: #{tpu_custom_call.1} parent=1 // pred_check_branch
      %44 = sbr.rel (0) target = $region25
    $region24: #{tpu_custom_call.1} parent=1 // pred_region
      _
    $region25: #{tpu_custom_call.1} parent=1 // pred_fallthru
      _
    // Predicated region
    $region26: #{tpu_custom_call.1} parent=1 // pred_check
      _
    $region27: #{tpu_custom_call.1} parent=1 // pred_check_branch
      %46 = sbr.rel (0) target = $region29
    $region28: #{tpu_custom_call.1} parent=1 // pred_region
      _
    $region29: #{tpu_custom_call.1} parent=1 // pred_fallthru
      _
    // Predicated region
    $region30: #{tpu_custom_call.1} parent=1 // pred_check
      _
    $region31: #{tpu_custom_call.1} parent=1 // pred_check_branch
      %48 = sbr.rel (0) target = $region33
    $region32: #{tpu_custom_call.1} parent=1 // pred_region
      %49 = dma.done [#allocation3], 256
    $region33: #{tpu_custom_call.1} parent=1 // pred_fallthru
      _
    // Predicated region
    $region34: #{tpu_custom_call.1} parent=1 // pred_check
      _
    $region35: #{tpu_custom_call.1} parent=1 // pred_check_branch
      %51 = sbr.rel (0) target = $region37
    $region36: #{tpu_custom_call.1} parent=1 // pred_region
      %52 = dma.done [#allocation6], 16
    $region37: #{tpu_custom_call.1} parent=1 // pred_fallthru
      _
    %v54 = vld [vmem:[%s0] sm:$0xff]
    %v55 = vpack.c.bf16 %v54, %v54
    %v56 = vld [vmem:[#allocation2] sm:$0xff]
    %v57 = vld [vmem:[#allocation2 + $0x8] sm:$0xff]
    %v58 = vpack.c.bf16 %v57, %v56
    %v59 = vld [vmem:[%s2] sm:$0x1]
    %v61 = vlaneseq
    %v62 = vshrl.u32 %v61, 7
    %v63 = vsub.s32 0, %v62
    %v64 = vrot.slane %v59, %v63
    %vm66 = vcmask 130048
    %v68 = vsel %vm66, %v55, 0
    %70 = vmatprep.subr.bf16.mxu0 0
    %71 = vmatpush1.bf16.msra.mxu0 0
    %72 = vmatprep.subr.bf16.mxu0 0
    %73 = vmatpush1.bf16.msra.mxu0 0
    %74 = vmatprep.subr.bf16.mxu0 0
    %75 = vmatpush1.bf16.msra.mxu0 0
    %76 = vmatprep.subr.bf16.mxu0 0
    %77 = vmatpush1.bf16.msra.mxu0 0
    %78 = vmatprep.subr.bf16.mxu0 0
    %79 = vmatpush1.bf16.msra.mxu0 0
    %80 = vmatprep.subr.bf16.mxu0 0
    %81 = vmatpush1.bf16.msra.mxu0 0
    %82 = vmatprep.subr.bf16.mxu0 0
    %83 = vmatpush1.bf16.msra.mxu0 0
    %84 = vmatprep.subr.bf16.mxu0 0
    %85 = vmatpush1.bf16.msra.mxu0 %v58
    %86 = vmatprep.subr.bf16.mxu0 0
    %87 = vmatpush2.bf16.msra.mxu0 0
    %88 = vmatprep.subr.bf16.mxu0 0
    %89 = vmatpush2.bf16.msra.mxu0 0
    %90 = vmatprep.subr.bf16.mxu0 0
    %91 = vmatpush2.bf16.msra.mxu0 0
    %92 = vmatprep.subr.bf16.mxu0 0
    %93 = vmatpush2.bf16.msra.mxu0 0
    %94 = vmatprep.subr.bf16.mxu0 0
    %95 = vmatpush2.bf16.msra.mxu0 0
    %96 = vmatprep.subr.bf16.mxu0 0
    %97 = vmatpush2.bf16.msra.mxu0 0
    %98 = vmatprep.subr.bf16.mxu0 0
    %99 = vmatpush2.bf16.msra.mxu0 0
    %100 = vmatprep.subr.bf16.mxu0 0
    %101 = vmatpush2.bf16.msra.mxu0 0
    %102 = vmatprep.mubr.bf16.mxu0 0
    %103 = vmatmul.mubr.bf16.gmra.mxu0 %v68
    %v104 = vpop.f32.mrf.mxu0
    %v105 = vadd.f32 %v64, %v104
    %v106 = vpop.f32.mrf.mxu0
    %v107 = vpop.f32.mrf.mxu0
    %v108 = vpop.f32.mrf.mxu0
    %109 = vdwg.mxu0
    %v110 = vmax.f32 %v105, 0.0
    %v111 = vpack.c.bf16 %v110, %v110
    %v112 = vld [vmem:[%s3] sm:$0xff]
    %v113 = vld [vmem:[%s3 + $0x8] sm:$0xff]
    %v114 = vld [vmem:[%s3 + $0x10] sm:$0xff]
    %v115 = vld [vmem:[%s3 + $0x18] sm:$0xff]
    %v116 = vpack.c.bf16 %v113, %v112
    %v117 = vpack.c.bf16 %v115, %v114
    %v118 = vld [vmem:[#allocation5] sm:$0x1]
    %v120 = vlaneseq
    %v121 = vshrl.u32 %v120, 7
    %v122 = vsub.s32 0, %v121
    %v123 = vrot.slane %v118, %v122
    %vm125 = vcmask 261120
    %v127 = vsel %vm125, %v111, 0
    %129 = vmatprep.subr.bf16.mxu0 0
    %130 = vmatpush1.bf16.msra.mxu0 0
    %131 = vmatprep.subr.bf16.mxu0 0
    %132 = vmatpush1.bf16.msra.mxu0 0
    %133 = vmatprep.subr.bf16.mxu0 0
    %134 = vmatpush1.bf16.msra.mxu0 0
    %135 = vmatprep.subr.bf16.mxu0 0
    %136 = vmatpush1.bf16.msra.mxu0 0
    %137 = vmatprep.subr.bf16.mxu0 0
    %138 = vmatpush1.bf16.msra.mxu0 0
    %139 = vmatprep.subr.bf16.mxu0 0
    %140 = vmatpush1.bf16.msra.mxu0 0
    %141 = vmatprep.subr.bf16.mxu0 0
    %142 = vmatpush1.bf16.msra.mxu0 %v117
    %143 = vmatprep.subr.bf16.mxu0 0
    %144 = vmatpush1.bf16.msra.mxu0 %v116
    %145 = vmatprep.subr.bf16.mxu0 0
    %146 = vmatpush2.bf16.msra.mxu0 0
    %147 = vmatprep.subr.bf16.mxu0 0
    %148 = vmatpush2.bf16.msra.mxu0 0
    %149 = vmatprep.subr.bf16.mxu0 0
    %150 = vmatpush2.bf16.msra.mxu0 0
    %151 = vmatprep.subr.bf16.mxu0 0
    %152 = vmatpush2.bf16.msra.mxu0 0
    %153 = vmatprep.subr.bf16.mxu0 0
    %154 = vmatpush2.bf16.msra.mxu0 0
    %155 = vmatprep.subr.bf16.mxu0 0
    %156 = vmatpush2.bf16.msra.mxu0 0
    %157 = vmatprep.subr.bf16.mxu0 0
    %158 = vmatpush2.bf16.msra.mxu0 0
    %159 = vmatprep.subr.bf16.mxu0 0
    %160 = vmatpush2.bf16.msra.mxu0 0
    %161 = vmatprep.mubr.bf16.mxu0 0
    %162 = vmatmul.mubr.bf16.gmra.mxu0 %v127
    %v163 = vpop.f32.mrf.mxu0
    %v164 = vadd.f32 %v123, %v163
    %v165 = vpop.f32.mrf.mxu0
    %v166 = vpop.f32.mrf.mxu0
    %v167 = vpop.f32.mrf.mxu0
    %168 = vdwg.mxu0
    %v169 = vsub.f32 0.0, %v164
    %v170 = vmul.f32 %v169, 1.442695
    %v171 = vpow.pop %v170
    %v172 = vadd.f32 %v171, 1.0
    %v173 = vrcp.pop %v172
    %v174 = vpack.c.bf16 %v173, %v173
    %v175 = vld [vmem:[%s5] sm:$0xff]
    %v176 = vld [vmem:[%s5 + $0x8] sm:$0xff]
    %v177 = vld [vmem:[%s5 + $0x10] sm:$0xff]
    %v178 = vld [vmem:[%s5 + $0x18] sm:$0xff]
    %v179 = vpack.c.bf16 %v176, %v175
    %v180 = vpack.c.bf16 %v178, %v177
    %v181 = vld [vmem:[%s6] sm:$0x1]
    %v183 = vlaneseq
    %v184 = vshrl.u32 %v183, 7
    %v185 = vsub.s32 0, %v184
    %v186 = vrot.slane %v181, %v185
    %v189 = vsel %vm125, %v174, 0
    %191 = vmatprep.subr.bf16.mxu0 0
    %192 = vmatpush1.bf16.msra.mxu0 0
    %193 = vmatprep.subr.bf16.mxu0 0
    %194 = vmatpush1.bf16.msra.mxu0 0
    %195 = vmatprep.subr.bf16.mxu0 0
    %196 = vmatpush1.bf16.msra.mxu0 0
    %197 = vmatprep.subr.bf16.mxu0 0
    %198 = vmatpush1.bf16.msra.mxu0 0
    %199 = vmatprep.subr.bf16.mxu0 0
    %200 = vmatpush1.bf16.msra.mxu0 0
    %201 = vmatprep.subr.bf16.mxu0 0
    %202 = vmatpush1.bf16.msra.mxu0 0
    %203 = vmatprep.subr.bf16.mxu0 0
    %204 = vmatpush1.bf16.msra.mxu0 %v180
    %205 = vmatprep.subr.bf16.mxu0 0
    %206 = vmatpush1.bf16.msra.mxu0 %v179
    %207 = vmatprep.subr.bf16.mxu0 0
    %208 = vmatpush2.bf16.msra.mxu0 0
    %209 = vmatprep.subr.bf16.mxu0 0
    %210 = vmatpush2.bf16.msra.mxu0 0
    %211 = vmatprep.subr.bf16.mxu0 0
    %212 = vmatpush2.bf16.msra.mxu0 0
    %213 = vmatprep.subr.bf16.mxu0 0
    %214 = vmatpush2.bf16.msra.mxu0 0
    %215 = vmatprep.subr.bf16.mxu0 0
    %216 = vmatpush2.bf16.msra.mxu0 0
    %217 = vmatprep.subr.bf16.mxu0 0
    %218 = vmatpush2.bf16.msra.mxu0 0
    %219 = vmatprep.subr.bf16.mxu0 0
    %220 = vmatpush2.bf16.msra.mxu0 0
    %221 = vmatprep.subr.bf16.mxu0 0
    %222 = vmatpush2.bf16.msra.mxu0 0
    %223 = vmatprep.mubr.bf16.mxu0 0
    %224 = vmatmul.mubr.bf16.gmra.mxu0 %v189
    %v225 = vpop.f32.mrf.mxu0
    %v226 = vadd.f32 %v186, %v225
    %v227 = vpop.f32.mrf.mxu0
    %v228 = vpop.f32.mrf.mxu0
    %v229 = vpop.f32.mrf.mxu0
    %230 = vdwg.mxu0
    %vm231 = vcmask 64512
    %232 = vst.msk [vmem:[#allocation7] sm:$0xff] %vm231, %v226
    // Predicated region
    $region38: #{tpu_custom_call.1} parent=1 // pred_check
      _
    $region39: #{tpu_custom_call.1} parent=1 // pred_check_branch
      %234 = sbr.rel (0) target = $region41
    $region40: #{tpu_custom_call.1} parent=1 // pred_region
      %s236 = ssub.s32 128, 128
      %237 = vsyncadd [#allocation4], %s236
      %s239 = sshll.u32 [#allocation7], 4
      %s240 = int_to_ptr.vmem [resolvable:$true] %s239
      %242 = dma.vmem_to_hbm [thread:$0]  %s240, 128, %s7, [#allocation4]
    $region41: #{tpu_custom_call.1} parent=1 // pred_fallthru
      _
    // Predicated region
    $region42: #{tpu_custom_call.1} parent=1 // pred_check
      _
    $region43: #{tpu_custom_call.1} parent=1 // pred_check_branch
      %244 = sbr.rel (0) target = $region45
    $region44: #{tpu_custom_call.1} parent=1 // pred_region
      %245 = dma.done [#allocation4], 128
    $region45: #{tpu_custom_call.1} parent=1 // pred_fallthru
      _
    %246 = vsyncpa [#allocation3], 1
    %247 = vsyncpa [#allocation6], 1
    %248 = vsyncpa [#allocation4], 1

</llo_original>
